<compile_context>
chip_gen: v7x
topology: tpu7x:2x2x1
jax: 0.10.0
libtpu: 0.0.40
codegen_flags: <defaults>
</compile_context>

<pallas_src>
import functools

import jax
import jax.numpy as jnp
from jax.experimental import pallas as pl
from jax.experimental.pallas import tpu as pltpu

EPS = 1e-5


def _round_up(n, m):
    return (n + m - 1) // m * m


def _physical_vmem_bytes():
    """Per-generation VMEM capacity with a conservative fallback (v7x)."""
    try:
        info = pltpu.get_tpu_info()
        for attr in ("vmem_capacity_bytes", "vmem_size_bytes", "vmem_bytes"):
            v = getattr(info, attr, None)
            if v:
                return int(v)
    except Exception:
        pass
    return 64 << 20


def prenorm_kernel(x_ref, w_ref, b_ref, o_ref, y_ref, *, d_valid):
    # x_ref: (tm, Dp)  input rows (original dtype), zero past d_valid
    # w_ref: (Dp, tn)  bf16 folded weight tile (diag(gamma) @ W), zero padded
    # b_ref: (1,  tn)  f32 folded bias tile (beta @ W + b)
    # o_ref: (tm, tn)  output tile
    # y_ref: (tm, Dp)  bf16 scratch: normalized rows, computed once per row tile
    @pl.when(pl.program_id(1) == 0)
    def _():
        x = x_ref[...].astype(jnp.float32)
        inv_d = jnp.float32(1.0 / d_valid)
        # Fused single statistics pass; padded lanes are zero, so no mask.
        mean = jnp.sum(x, axis=-1, keepdims=True) * inv_d
        ex2 = jnp.sum(x * x, axis=-1, keepdims=True) * inv_d
        var = ex2 - mean * mean
        inv = jax.lax.rsqrt(var + EPS)                    # EUP slot
        y_ref[...] = ((x - mean) * inv).astype(y_ref.dtype)

    out = jnp.dot(y_ref[...], w_ref[...],
                  preferred_element_type=jnp.float32) + b_ref[...]
    o_ref[...] = out.astype(o_ref.dtype)


def prepare_prenorm_params(gamma, beta, w, wb, dp):
    """One-time parameter transform, hoisted out of the per-call hot path.

    Folds the LayerNorm affine into the Linear and pads to the lane-dense
    feature dim dp:  W' = diag(gamma) @ W (bf16),  b' = beta @ W + wb (f32).
    """
    D = w.shape[0]
    wf = gamma.astype(jnp.float32)[:, None] * w.astype(jnp.float32)
    bf = beta.astype(jnp.float32) @ w.astype(jnp.float32) + wb.astype(jnp.float32)
    if dp == D:
        w2 = wf.astype(jnp.bfloat16)
        b2 = bf.reshape(1, D)
    else:
        w2 = jnp.zeros((dp, dp), jnp.bfloat16).at[:D, :D].set(wf.astype(jnp.bfloat16))
        b2 = jnp.zeros((1, dp), jnp.float32).at[0, :D].set(bf)
    return w2, b2


def prenorm_apply(x, w_folded, b_folded, d_valid, *, tm=256):
    """x: (..., D) -> Linear(LayerNorm(x)) using pre-folded, pre-padded params."""
    *lead, D = x.shape
    assert D == d_valid
    rows = 1
    for n in lead:
        rows *= n
    Dp = w_folded.shape[0]
    assert Dp % 128 == 0 and w_folded.shape == (Dp, Dp) and b_folded.shape == (1, Dp)

    x_bytes = jnp.dtype(x.dtype).itemsize
    out_bytes = x_bytes

    # Per-generation VMEM budget (~48 MiB v7x, ~96 MiB v5e/v6e) with headroom
    # left for Mosaic internal scratch / compiler temporaries.
    budget = int(_physical_vmem_bytes() * 3 // 4)

    def footprint(tm_, tn_):
        return (2 * tm_ * Dp * x_bytes        # x tile, double-buffered
                + 2 * Dp * tn_ * 2            # bf16 weight tile, double-buffered
                + 2 * tm_ * tn_ * out_bytes   # out tile, double-buffered
                + tm_ * Dp * 2                # bf16 normalized-row scratch
                + 4 * tm_ * Dp * 4            # f32 LN temporaries
                + 2 * tn_ * 4)                # bias tile

    # Row tile: multiple of 8, no taller than the (rounded) row count.
    tm = max(8, min(_round_up(tm, 8), _round_up(rows, 8)))

    # Column tile: keep the whole weight resident (tn = Dp, constant block
    # index -> single HBM fetch) whenever it fits the budget; otherwise fall
    # back to the largest lane-dense divisor of Dp that fits.
    tn = None
    for cand in [Dp] + [t for t in (2048, 1024, 512, 256, 128)
                        if t < Dp and Dp % t == 0]:
        if footprint(tm, cand) <= budget:
            tn = cand
            break
    if tn is None:
        tn = 128
        while tm > 8 and footprint(tm, tn) > budget:
            tm = max(8, _round_up(tm // 2, 8))

    # Spend leftover budget on a taller row tile (fewer grid steps, fewer
    # weight re-streams when W is not resident) — biggest win on v5e/v6e.
    while tm < min(1024, _round_up(rows, 8)) and footprint(2 * tm, tn) <= budget:
        tm *= 2
    tm = min(tm, _round_up(rows, 8))

    rows_p = _round_up(rows, tm)

    # Skip the wrapper-side pad (an extra, un-hidden HBM pass over x) when it
    # is a no-op.
    x_flat = x.reshape(rows, D)
    if rows_p == rows and Dp == D:
        x2 = x_flat
    else:
        x2 = jnp.zeros((rows_p, Dp), x.dtype).at[:rows, :D].set(x_flat)

    vmem_bytes = int(min(max(footprint(tm, tn) * 3 // 2, 16 << 20), budget))

    kernel = functools.partial(prenorm_kernel, d_valid=D)

    out = pl.pallas_call(
        kernel,
        out_shape=jax.ShapeDtypeStruct((rows_p, Dp), x.dtype),
        grid_spec=pltpu.PrefetchScalarGridSpec(
            num_scalar_prefetch=0,
            grid=(rows_p // tm, Dp // tn),
            in_specs=[
                pl.BlockSpec((tm, Dp), lambda i, j: (i, 0)),   # x rows (held across j)
                pl.BlockSpec((Dp, tn), lambda i, j: (0, j)),   # folded weight tile
                pl.BlockSpec((1, tn), lambda i, j: (0, j)),    # folded bias tile
            ],
            out_specs=pl.BlockSpec((tm, tn), lambda i, j: (i, j)),
            scratch_shapes=[pltpu.VMEM((tm, Dp), jnp.bfloat16)],
        ),
        compiler_params=pltpu.CompilerParams(
            dimension_semantics=("parallel", "arbitrary"),
            vmem_limit_bytes=vmem_bytes),
    )(x2, w_folded, b_folded)

    return out[:rows, :D].reshape(x.shape)


def prenorm_ref(x, gamma, beta, w, wb):
    """Reference matching the kernel's numeric path (f32 LN stats, folded
    gamma/beta, bf16 MXU operands with f32 accumulation)."""
    xf = x.astype(jnp.float32)
    mean = jnp.mean(xf, axis=-1, keepdims=True)
    var = jnp.mean(xf * xf, axis=-1, keepdims=True) - mean * mean
    z = (xf - mean) * jax.lax.rsqrt(var + EPS)
    wf = (gamma.astype(jnp.float32)[:, None] * w.astype(jnp.float32)).astype(jnp.bfloat16)
    bf = beta.astype(jnp.float32) @ w.astype(jnp.float32) + wb.astype(jnp.float32)
    out = jnp.dot(z.astype(jnp.bfloat16), wf,
                  preferred_element_type=jnp.float32) + bf
    return out.astype(x.dtype)


if __name__ == "__main__":
    key = jax.random.PRNGKey(0)
    B, S, D = 2, 8, 32
    kx, kw, kg, kb, kwb = jax.random.split(key, 5)

    x = jax.random.normal(kx, (B, S, D), dtype=jnp.float32)

    # LayerNorm params (learnable in PyTorch; perturbed for a stronger check).
    gamma = 1.0 + 0.1 * jax.random.normal(kg, (D,), dtype=jnp.float32)
    beta = 0.05 * jax.random.normal(kb, (D,), dtype=jnp.float32)

    # fn = Linear(D, D)
    w = jax.random.normal(kw, (D, D), dtype=jnp.float32) * 0.02
    wb = 0.01 * jax.random.normal(kwb, (D,), dtype=jnp.float32)

    # One-time parameter transform (outside the per-call hot path).
    Dp = _round_up(D, 128)
    w_folded, b_folded = prepare_prenorm_params(gamma, beta, w, wb, Dp)

    out = prenorm_apply(x, w_folded, b_folded, D)
    out = jax.block_until_ready(out)

    ref = prenorm_ref(x, gamma, beta, w, wb)
    assert out.shape == (B, S, D)
    assert jnp.allclose(out, ref, atol=2e-3, rtol=2e-2), "mismatch vs JAX reference"

    print("KERNEL_OK")
</pallas_src>

<mosaic_0001>
module attributes {stable_mosaic.version = 11 : i64} {
  func.func @prenorm_kernel(%arg0: i32, %arg1: i32, %arg2: memref<16x128xf32, #tpu.memory_space<vmem>>, %arg3: memref<128x128xbf16, #tpu.memory_space<vmem>>, %arg4: memref<1x128xf32, #tpu.memory_space<vmem>>, %arg5: memref<16x128xf32, #tpu.memory_space<vmem>>, %arg6: memref<16x128xbf16, #tpu.memory_space<vmem>>) attributes {dimension_semantics = [#tpu.dimension_semantics<parallel>, #tpu.dimension_semantics<arbitrary>], iteration_bounds = array<i64: 1, 1>, scalar_prefetch = 0 : i64, scratch_operands = 1 : i64, tpu.core_type = #tpu.core_type<tc>, window_params = [{transform_indices = @transform_0, window_bounds = array<i64: 16, 128>}, {transform_indices = @transform_1, window_bounds = array<i64: 128, 128>}, {transform_indices = @transform_2, window_bounds = array<i64: 1, 128>}, {transform_indices = @transform_3, window_bounds = array<i64: 16, 128>}]} {
    %c0_i32 = arith.constant 0 : i32
    %0 = arith.cmpi eq, %arg1, %c0_i32 : i32
    %1 = arith.extui %0 : i1 to i32
    %c0_i32_0 = arith.constant 0 : i32
    %2 = arith.cmpi ne, %1, %c0_i32_0 : i32
    scf.if %2 {
      %c0_8 = arith.constant 0 : index
      %c0_9 = arith.constant 0 : index
      %10 = vector.load %arg2[%c0_8, %c0_9] : memref<16x128xf32, #tpu.memory_space<vmem>>, vector<16x128xf32>
      %cst_10 = arith.constant dense<0.000000e+00> : vector<16xf32>
      %11 = vector.multi_reduction <add>, %10, %cst_10 [1] : vector<16x128xf32> to vector<16xf32>
      %12 = vector.shape_cast %11 : vector<16xf32> to vector<16x1xf32>
      %cst_11 = arith.constant 3.125000e-02 : f32
      %13 = vector.broadcast %cst_11 : f32 to vector<16x1xf32>
      %14 = arith.mulf %12, %13 : vector<16x1xf32>
      %15 = arith.mulf %10, %10 : vector<16x128xf32>
      %cst_12 = arith.constant dense<0.000000e+00> : vector<16xf32>
      %16 = vector.multi_reduction <add>, %15, %cst_12 [1] : vector<16x128xf32> to vector<16xf32>
      %17 = vector.shape_cast %16 : vector<16xf32> to vector<16x1xf32>
      %cst_13 = arith.constant 3.125000e-02 : f32
      %18 = vector.broadcast %cst_13 : f32 to vector<16x1xf32>
      %19 = arith.mulf %17, %18 : vector<16x1xf32>
      %20 = arith.mulf %14, %14 : vector<16x1xf32>
      %21 = arith.subf %19, %20 : vector<16x1xf32>
      %cst_14 = arith.constant 9.99999974E-6 : f32
      %22 = vector.broadcast %cst_14 : f32 to vector<16x1xf32>
      %23 = arith.addf %21, %22 : vector<16x1xf32>
      %24 = math.rsqrt %23 : vector<16x1xf32>
      %25 = vector.broadcast %14 : vector<16x1xf32> to vector<16x128xf32>
      %26 = arith.subf %10, %25 : vector<16x128xf32>
      %27 = vector.broadcast %24 : vector<16x1xf32> to vector<16x128xf32>
      %28 = arith.mulf %26, %27 : vector<16x128xf32>
      %29 = arith.truncf %28 : vector<16x128xf32> to vector<16x128xbf16>
      %c0_15 = arith.constant 0 : index
      %c0_16 = arith.constant 0 : index
      %30 = vector.load %arg6[%c0_15, %c0_16] : memref<16x128xbf16, #tpu.memory_space<vmem>>, vector<16x128xbf16>
      tpu.vector_store %arg6[%c0_15, %c0_16], %29 {strides = array<i32>} : memref<16x128xbf16, #tpu.memory_space<vmem>>, vector<16x128xbf16>,
    } else {
    }
    %c0 = arith.constant 0 : index
    %c0_1 = arith.constant 0 : index
    %3 = vector.load %arg6[%c0, %c0_1] : memref<16x128xbf16, #tpu.memory_space<vmem>>, vector<16x128xbf16>
    %c0_2 = arith.constant 0 : index
    %c0_3 = arith.constant 0 : index
    %4 = vector.load %arg3[%c0_2, %c0_3] : memref<128x128xbf16, #tpu.memory_space<vmem>>, vector<128x128xbf16>
    %cst = arith.constant dense<0.000000e+00> : vector<16x128xf32>
    %5 = tpu.matmul %3, %4, %cst {dimension_numbers = #tpu.dot_dimension_numbers<[1], [0], [0], [1], [0, 0, 1, 1], [], []>} : vector<16x128xbf16>, vector<128x128xbf16>, vector<16x128xf32> -> vector<16x128xf32>
    %c0_4 = arith.constant 0 : index
    %c0_5 = arith.constant 0 : index
    %6 = vector.load %arg4[%c0_4, %c0_5] : memref<1x128xf32, #tpu.memory_space<vmem>>, vector<1x128xf32>
    %7 = vector.broadcast %6 : vector<1x128xf32> to vector<16x128xf32>
    %8 = arith.addf %5, %7 : vector<16x128xf32>
    %c0_6 = arith.constant 0 : index
    %c0_7 = arith.constant 0 : index
    %9 = vector.load %arg5[%c0_6, %c0_7] : memref<16x128xf32, #tpu.memory_space<vmem>>, vector<16x128xf32>
    tpu.vector_store %arg5[%c0_6, %c0_7], %8 {strides = array<i32>} : memref<16x128xf32, #tpu.memory_space<vmem>>, vector<16x128xf32>,
    return
  }
  func.func @transform_0(%arg0: i32, %arg1: i32) -> (i32, i32) {
    %c0_i32 = arith.constant 0 : i32
    %c0_i32_0 = arith.constant 0 : i32
    return %arg0, %c0_i32 : i32, i32
  }
  func.func @transform_1(%arg0: i32, %arg1: i32) -> (i32, i32) {
    %c0_i32 = arith.constant 0 : i32
    %c0_i32_0 = arith.constant 0 : i32
    return %c0_i32, %arg1 : i32, i32
  }
  func.func @transform_2(%arg0: i32, %arg1: i32) -> (i32, i32) {
    %c0_i32 = arith.constant 0 : i32
    %c0_i32_0 = arith.constant 0 : i32
    return %c0_i32, %arg1 : i32, i32
  }
  func.func @transform_3(%arg0: i32, %arg1: i32) -> (i32, i32) {
    %c0_i32 = arith.constant 0 : i32
    return %arg0, %arg1 : i32, i32
  }
}

</mosaic_0001>

<llo_original>
// kernel: tpu_custom_call.1
$region0: #{tpu_custom_call.1}
  #allocation0 [shape = 'u32[]', space=smem, size = 0x4, offset = 0x4, fixed_abs, tag = 'smem constant byte address 0x4 - core index']
  #allocation1 [shape = 'u32[144,128]{1,0:T(1,128)}', space=vmem, size = 0x12000, scoped, tag = 'internal scratch']
  #allocation2 [shape = 'bf16[16,128]{1,0:T(16,128)(2,1)}', space=vmem, size = 0x1000, scoped, tag = 'scratch operand']
  %s0 = inlined_call_operand.hbm [shape: f32[16,128], index: 0, kind: input, shape index: {}]
  %s1 = inlined_call_operand.hbm [shape: bf16[128,128], index: 1, kind: input, shape index: {}]
  %s2 = inlined_call_operand.vmem [shape: f32[1,128], index: 2, kind: input, shape index: {}]
  %s3 = inlined_call_operand.hbm [shape: f32[16,128], index: 3, kind: output, shape index: {}]
  %s4 = sld [smem:[#allocation0]]
  $region34: #{tpu_custom_call.1} parent=0
    _
  %s6 = ssub.s32 1, %s4
  %s7 = scalar_select 0, %s6, %s4
  $region1: #{tpu_custom_call.1} parent=0
    #allocation3 [shape = 'u8[8192]{0}', space=vmem, size = 0x2000, scoped, tag = 'input window, operand 0, single buffered']
    #allocation4 [shape = 's32[1]{0}', space=sflag, size = 0x4, scoped, tag = 'scoped memory for tpu_custom_call.1']
    #allocation5 [shape = 's32[1]{0}', space=sflag, size = 0x4, scoped, tag = 'scoped memory for tpu_custom_call.1']
    #allocation6 [shape = 'u8[32768]{0}', space=vmem, size = 0x8000, scoped, tag = 'input window, operand 1, single buffered']
    #allocation7 [shape = 's32[1]{0}', space=sflag, size = 0x4, scoped, tag = 'scoped memory for tpu_custom_call.1']
    #allocation8 [shape = 'u8[8192]{0}', space=vmem, size = 0x2000, scoped, tag = 'output window, operand 0, single buffered']
    %8 = vsyncpa [#allocation4], 0
    %9 = vsyncpa [#allocation7], 0
    %10 = vsyncpa [#allocation5], 0
    // Predicated region
    $region2: #{tpu_custom_call.1} parent=1 // pred_check
      _
    $region3: #{tpu_custom_call.1} parent=1 // pred_check_branch
      %12 = sbr.rel (0) target = $region5
    $region4: #{tpu_custom_call.1} parent=1 // pred_region
      %s14 = ssub.s32 256, 256
      %15 = vsyncadd [#allocation4], %s14
      %s16 = sshll.u32 [#allocation3], 4
      %s17 = int_to_ptr.vmem [resolvable:$true] %s16
      %22 = dma.hbm_to_vmem [thread:$0]  %s0, 256, %s17, [#allocation4], 128, 128, 8
    $region5: #{tpu_custom_call.1} parent=1 // pred_fallthru
      _
    // Predicated region
    $region6: #{tpu_custom_call.1} parent=1 // pred_check
      _
    $region7: #{tpu_custom_call.1} parent=1 // pred_check_branch
      %24 = sbr.rel (0) target = $region9
    $region8: #{tpu_custom_call.1} parent=1 // pred_region
      %s26 = ssub.s32 1024, 1024
      %27 = vsyncadd [#allocation7], %s26
      %s28 = sshll.u32 [#allocation6], 4
      %s29 = int_to_ptr.vmem [resolvable:$true] %s28
      %34 = dma.hbm_to_vmem [thread:$0]  %s1, 1024, %s29, [#allocation7], 64, 64, 4
    $region9: #{tpu_custom_call.1} parent=1 // pred_fallthru
      _
    // Predicated region
    $region10: #{tpu_custom_call.1} parent=1 // pred_check
      _
    $region11: #{tpu_custom_call.1} parent=1 // pred_check_branch
      %36 = sbr.rel (0) target = $region13
    $region12: #{tpu_custom_call.1} parent=1 // pred_region
      _
    $region13: #{tpu_custom_call.1} parent=1 // pred_fallthru
      _
    // Predicated region
    $region14: #{tpu_custom_call.1} parent=1 // pred_check
      _
    $region15: #{tpu_custom_call.1} parent=1 // pred_check_branch
      %38 = sbr.rel (0) target = $region17
    $region16: #{tpu_custom_call.1} parent=1 // pred_region
      %39 = dma.done [#allocation4], 256
    $region17: #{tpu_custom_call.1} parent=1 // pred_fallthru
      _
    // Predicated region
    $region18: #{tpu_custom_call.1} parent=1 // pred_check
      _
    $region19: #{tpu_custom_call.1} parent=1 // pred_check_branch
      %41 = sbr.rel (0) target = $region21
    $region20: #{tpu_custom_call.1} parent=1 // pred_region
      %42 = dma.done [#allocation7], 1024
    $region21: #{tpu_custom_call.1} parent=1 // pred_fallthru
      _
    %p44 = scmp.eq.s32.totalorder 0, 0
    // Predicated region
    $region22: #{tpu_custom_call.1} parent=1 // pred_check
      %p45 = pneg %p44
    $region23: #{tpu_custom_call.1} parent=1 // pred_check_branch
      %47 = sbr.rel (%p45) target = $region25
    $region24: #{tpu_custom_call.1} parent=1 // pred_region
      %v48 = vld [vmem:[#allocation3] sm:$0xff]
      %v49 = vld [vmem:[#allocation3 + $0x8] sm:$0xff]
      %50 = vadd.xlane.f32.xlu0 %v48
      %v51 = vpop.xlane.xlu0 %50
      %52 = vadd.xlane.f32.xlu0 %v49
      %v53 = vpop.xlane.xlu0 %52
      %v54 = vmul.f32 %v51, 0.03125
      %v55 = vmul.f32 %v53, 0.03125
      %v56 = vmul.f32 %v48, %v48
      %v57 = vmul.f32 %v49, %v49
      %58 = vadd.xlane.f32.xlu0 %v56
      %v59 = vpop.xlane.xlu0 %58
      %60 = vadd.xlane.f32.xlu0 %v57
      %v61 = vpop.xlane.xlu0 %60
      %v62 = vmul.f32 %v59, 0.03125
      %v63 = vmul.f32 %v61, 0.03125
      %v64 = vmul.f32 %v54, %v54
      %v65 = vmul.f32 %v55, %v55
      %v66 = vsub.f32 %v62, %v64
      %v67 = vsub.f32 %v63, %v65
      %v68 = vadd.f32 %v66, 1e-05
      %v69 = vadd.f32 %v67, 1e-05
      %v70 = vrsqrt.pop %v68
      %v71 = vrsqrt.pop %v69
      %v72 = vsub.f32 %v48, %v54
      %v73 = vsub.f32 %v49, %v55
      %v74 = vmul.f32 %v72, %v70
      %v75 = vmul.f32 %v73, %v71
      %v76 = vpack.c.bf16 %v75, %v74
      %77 = vst [vmem:[#allocation2] sm:$0xff] %v76
    $region25: #{tpu_custom_call.1} parent=1 // pred_fallthru
      _
    %v78 = vld [vmem:[#allocation2] sm:$0xff]
    %v79 = vld [vmem:[#allocation6] sm:$0xf]
    %v80 = vld [vmem:[#allocation6 + $0x4] sm:$0xf]
    %v81 = vld [vmem:[#allocation6 + $0x8] sm:$0xf]
    %v82 = vld [vmem:[#allocation6 + $0xc] sm:$0xf]
    %v83 = vld [vmem:[#allocation6 + $0x10] sm:$0xf]
    %v84 = vld [vmem:[#allocation6 + $0x14] sm:$0xf]
    %v85 = vld [vmem:[#allocation6 + $0x18] sm:$0xf]
    %v86 = vld [vmem:[#allocation6 + $0x1c] sm:$0xf]
    %v87 = vld [vmem:[#allocation6 + $0x20] sm:$0xf]
    %v88 = vld [vmem:[#allocation6 + $0x24] sm:$0xf]
    %v89 = vld [vmem:[#allocation6 + $0x28] sm:$0xf]
    %v90 = vld [vmem:[#allocation6 + $0x2c] sm:$0xf]
    %v91 = vld [vmem:[#allocation6 + $0x30] sm:$0xf]
    %v92 = vld [vmem:[#allocation6 + $0x34] sm:$0xf]
    %v93 = vld [vmem:[#allocation6 + $0x38] sm:$0xf]
    %v94 = vld [vmem:[#allocation6 + $0x3c] sm:$0xf]
    %v95 = vld [vmem:[%s2] sm:$0x1]
    %v97 = vlaneseq
    %v98 = vshrl.u32 %v97, 7
    %v99 = vsub.s32 0, %v98
    %v100 = vrot.slane %v95, %v99
    %v118 = vunpack.c.l.b16 %v79
    %v119 = vunpack.c.l.b16 %v80
    %v120 = vunpack.c.l.b16 %v81
    %v121 = vunpack.c.l.b16 %v82
    %v122 = vunpack.c.l.b16 %v83
    %v123 = vunpack.c.l.b16 %v84
    %v124 = vunpack.c.l.b16 %v85
    %v125 = vunpack.c.l.b16 %v86
    %v126 = vunpack.c.l.b16 %v87
    %v127 = vunpack.c.l.b16 %v88
    %v128 = vunpack.c.l.b16 %v89
    %v129 = vunpack.c.l.b16 %v90
    %v130 = vunpack.c.l.b16 %v91
    %v131 = vunpack.c.l.b16 %v92
    %v132 = vunpack.c.l.b16 %v93
    %v133 = vunpack.c.l.b16 %v94
    %v134 = vpack.c.b16 %v119, %v118
    %v135 = vpack.c.b16 %v121, %v120
    %v136 = vpack.c.b16 %v123, %v122
    %v137 = vpack.c.b16 %v125, %v124
    %v138 = vpack.c.b16 %v127, %v126
    %v139 = vpack.c.b16 %v129, %v128
    %v140 = vpack.c.b16 %v131, %v130
    %v141 = vpack.c.b16 %v133, %v132
    %150 = vmatprep.subr.bf16.mxu0 0
    %151 = vmatpush1.bf16.msra.mxu0 %v134
    %152 = vmatprep.subr.bf16.mxu0 0
    %153 = vmatpush1.bf16.msra.mxu0 %v135
    %154 = vmatprep.subr.bf16.mxu0 0
    %155 = vmatpush1.bf16.msra.mxu0 %v136
    %156 = vmatprep.subr.bf16.mxu0 0
    %157 = vmatpush1.bf16.msra.mxu0 %v137
    %158 = vmatprep.subr.bf16.mxu0 0
    %159 = vmatpush1.bf16.msra.mxu0 %v138
    %160 = vmatprep.subr.bf16.mxu0 0
    %161 = vmatpush1.bf16.msra.mxu0 %v139
    %162 = vmatprep.subr.bf16.mxu0 0
    %163 = vmatpush1.bf16.msra.mxu0 %v140
    %164 = vmatprep.subr.bf16.mxu0 0
    %165 = vmatpush1.bf16.msra.mxu0 %v141
    %166 = vmatprep.subr.bf16.mxu0 0
    %167 = vmatpush1.bf16.msra.mxu0 0
    %168 = vmatprep.subr.bf16.mxu0 0
    %169 = vmatpush1.bf16.msra.mxu0 0
    %170 = vmatprep.subr.bf16.mxu0 0
    %171 = vmatpush1.bf16.msra.mxu0 0
    %172 = vmatprep.subr.bf16.mxu0 0
    %173 = vmatpush1.bf16.msra.mxu0 0
    %174 = vmatprep.subr.bf16.mxu0 0
    %175 = vmatpush1.bf16.msra.mxu0 0
    %176 = vmatprep.subr.bf16.mxu0 0
    %177 = vmatpush1.bf16.msra.mxu0 0
    %178 = vmatprep.subr.bf16.mxu0 0
    %179 = vmatpush1.bf16.msra.mxu0 0
    %180 = vmatprep.subr.bf16.mxu0 0
    %181 = vmatpush1.bf16.msra.mxu0 0
    %182 = vmatprep.mubr.bf16.mxu0 0
    %183 = vmatmul.mubr.bf16.gmra.mrb[0].mxu0 %v78
    %v184 = vpop.f32.mrb[0].mxu0
    %v185 = vadd.f32 %v100, %v184
    %v186 = vpop.f32.mrb[0].mxu0
    %v187 = vpop.f32.mrb[0].mxu0
    %v188 = vadd.f32 %v100, %v187
    %v189 = vpop.f32.mrb[0].mxu0
    %190 = vdwg.mxu0
    %191 = vst [vmem:[#allocation8] sm:$0xff] %v185
    %192 = vst [vmem:[#allocation8 + $0x8] sm:$0xff] %v188
    // Predicated region
    $region26: #{tpu_custom_call.1} parent=1 // pred_check
      _
    $region27: #{tpu_custom_call.1} parent=1 // pred_check_branch
      %194 = sbr.rel (0) target = $region29
    $region28: #{tpu_custom_call.1} parent=1 // pred_region
      %s196 = ssub.s32 256, 256
      %197 = vsyncadd [#allocation5], %s196
      %s198 = sshll.u32 [#allocation8], 4
      %s199 = int_to_ptr.vmem [resolvable:$true] %s198
      %204 = dma.vmem_to_hbm [thread:$0]  %s199, 256, %s3, [#allocation5], 128, 128, 8
    $region29: #{tpu_custom_call.1} parent=1 // pred_fallthru
      _
    // Predicated region
    $region30: #{tpu_custom_call.1} parent=1 // pred_check
      _
    $region31: #{tpu_custom_call.1} parent=1 // pred_check_branch
      %206 = sbr.rel (0) target = $region33
    $region32: #{tpu_custom_call.1} parent=1 // pred_region
      %207 = dma.done [#allocation5], 256
    $region33: #{tpu_custom_call.1} parent=1 // pred_fallthru
      _
    %208 = vsyncpa [#allocation4], 1
    %209 = vsyncpa [#allocation7], 1
    %210 = vsyncpa [#allocation5], 1

</llo_original>
